<compile_context>
chip_gen: v7x
topology: tpu7x:2x2x1
jax: 0.10.0
libtpu: 0.0.40
codegen_flags: <defaults>
</compile_context>

<pallas_src>
import math
from dataclasses import dataclass

import jax
import jax.numpy as jnp
from jax.experimental import pallas as pl
from jax.experimental.pallas import tpu as pltpu

MIB = 1024 * 1024


@dataclass
class ModulationOut:
    shift: jax.Array
    scale: jax.Array
    gate: jax.Array


# ----------------------------------------------------------------------------
# Kernel
# ----------------------------------------------------------------------------
def _modulation_kernel(x_ref, w_ref, scale_ref, b_ref, o_ref):
    # x_ref:     (B, dim)            resident activation block (same every step)
    # w_ref:     (dim, tile_n)       streamed contiguous weight tile (leading
    #                                grid dim squeezed away)
    # scale_ref: (grid_n, 1, tile_n) resident f32 per-output-column scales
    # b_ref:     (grid_n, 1, tile_n) resident f32 bias
    # o_ref:     (B, tile_n)         output tile
    j = pl.program_id(0)

    x = x_ref[...].astype(jnp.float32)
    silu = x * jax.nn.sigmoid(x)                       # exp/recip on EUP, tiny tile

    w = w_ref[...]
    if jnp.issubdtype(w.dtype, jnp.integer):
        # int8-quantized weights: dequant cast on the VPU (hidden under the
        # weight-tile DMA); the f32 column scale is applied in the epilogue.
        w = w.astype(jnp.bfloat16)

    y = jnp.dot(silu.astype(w.dtype), w, preferred_element_type=jnp.float32)
    y = y * scale_ref[j] + b_ref[j]                    # f32 epilogue (scale + bias)
    o_ref[...] = y.astype(o_ref.dtype)


# ----------------------------------------------------------------------------
# Tiling / VMEM heuristics (generation-aware)
# ----------------------------------------------------------------------------
def _vmem_capacity_bytes() -> int:
    try:
        return int(pltpu.get_tpu_info().vmem_capacity_bytes)
    except Exception:
        return 128 * MIB  # conservative default (v5e/v6e sized)


def _num_tensorcores(vmem_cap: int) -> int:
    # TODO(synk): query the real TensorCore count; 64 MiB/TC VMEM => v7x (2 TCs).
    return 2 if vmem_cap <= 72 * MIB else 1


def _pick_tile_n(dim: int, out_dim: int, w_itemsize: int,
                 vmem_cap: int, n_cores: int) -> int:
    """Largest 256-aligned N tile whose double-buffered weight stream fits the
    generation-specific budget; nudged so grid_n splits evenly across cores."""
    if out_dim <= 512:
        return out_dim                                 # single tile
    small_vmem = vmem_cap <= 72 * MIB                  # v7x: 64 MiB per TC
    budget = (24 if small_vmem else 56) * MIB          # double-buffered weight stream
    cap = 2048 if small_vmem else 4096
    out_ceil = pl.cdiv(out_dim, 256) * 256

    tile = (budget // (2 * dim * w_itemsize)) // 256 * 256
    tile = max(256, min(int(tile), cap, out_ceil))

    grid = pl.cdiv(out_dim, tile)
    if grid <= 1 or n_cores <= 1 or grid % n_cores == 0:
        return tile
    # Look for a 256-aligned tile (allowing ~12.5% growth) whose tile count
    # splits evenly across the TensorCores; largest such tile wins.
    hi = min(tile * 9 // 8 // 256 * 256, out_ceil)
    for t in range(hi, 255, -256):
        if pl.cdiv(out_dim, t) % n_cores == 0:
            return t
    return tile


def _vmem_limit_bytes(B, dim, tile_n, grid_n, w_itemsize, act_itemsize, vmem_cap):
    need = (2 * dim * tile_n * w_itemsize              # double-buffered weight tiles
            + 2 * B * tile_n * act_itemsize            # double-buffered output tiles
            + B * dim * act_itemsize                   # resident activation block
            + 2 * grid_n * tile_n * 4)                 # resident f32 bias + scale
    need = need * 5 // 4                               # 25% headroom
    hi = (48 if vmem_cap <= 72 * MIB else 96) * MIB
    return int(min(max(need, 16 * MIB), hi))


# ----------------------------------------------------------------------------
# pallas_call wrapper
# ----------------------------------------------------------------------------
def modulation_matmul(vec, w_blocked, scale_blk, bias_blk, *, tile_n, out_dim,
                      vmem_cap):
    """vec: (B, dim); w_blocked: (grid_n, dim, tile_n); scale/bias: (grid_n, 1, tile_n).
    Returns silu(vec) @ W + b of shape (B, out_dim)."""
    B, dim = vec.shape
    grid_n = w_blocked.shape[0]

    vmem_limit = _vmem_limit_bytes(
        B, dim, tile_n, grid_n,
        jnp.dtype(w_blocked.dtype).itemsize,
        jnp.dtype(vec.dtype).itemsize, vmem_cap)

    return pl.pallas_call(
        _modulation_kernel,
        out_shape=jax.ShapeDtypeStruct((B, out_dim), vec.dtype),
        grid_spec=pltpu.PrefetchScalarGridSpec(
            num_scalar_prefetch=0,
            grid=(grid_n,),
            in_specs=[
                # activation: resident (same block every step)
                pl.BlockSpec((B, dim), lambda j: (0, 0)),
                # weight: contiguous tile streamed over N (leading dim squeezed)
                pl.BlockSpec((None, dim, tile_n), lambda j: (j, 0, 0)),
                # per-column scale + bias: resident, indexed in-kernel by j
                pl.BlockSpec((grid_n, 1, tile_n), lambda j: (0, 0, 0)),
                pl.BlockSpec((grid_n, 1, tile_n), lambda j: (0, 0, 0)),
            ],
            out_specs=pl.BlockSpec((B, tile_n), lambda j: (0, j)),
        ),
        compiler_params=pltpu.CompilerParams(
            dimension_semantics=("parallel",),   # independent N tiles (2 TCs on v7x)
            vmem_limit_bytes=vmem_limit),
    )(vec, w_blocked, scale_blk, bias_blk)


# ----------------------------------------------------------------------------
# Module
# ----------------------------------------------------------------------------
class Modulation:
    """JAX/Pallas port of the PyTorch Modulation module."""

    def __init__(self, dim: int, double: bool, key: jax.Array,
                 param_dtype=jnp.bfloat16, quantize: bool = False,
                 tile_n: int | None = None):
        self.dim = dim
        self.is_double = double
        self.multiplier = 6 if double else 3
        out_features = self.multiplier * dim
        self.out_features = out_features

        kw, kb = jax.random.split(key)
        # Deterministic init mimicking nn.Linear's uniform(-1/sqrt(dim), 1/sqrt(dim)).
        bound = 1.0 / math.sqrt(dim)
        w = jax.random.uniform(kw, (out_features, dim), jnp.float32, -bound, bound)
        b = jax.random.uniform(kb, (out_features,), jnp.float32, -bound, bound)
        # f32 master copies (only used for reference checks).
        self._w_master = w
        self._b_master = b

        self.vmem_cap = _vmem_capacity_bytes()
        n_cores = _num_tensorcores(self.vmem_cap)
        w_store_itemsize = 1 if quantize else jnp.dtype(param_dtype).itemsize
        if tile_n is None:
            tile_n = _pick_tile_n(dim, out_features, w_store_itemsize,
                                  self.vmem_cap, n_cores)
        grid_n = pl.cdiv(out_features, tile_n)
        padded_out = grid_n * tile_n
        self.tile_n, self.grid_n = tile_n, grid_n

        w_t = w.T                                              # (dim, out)
        if quantize:
            # int8 per-output-column symmetric quantization; scale applied in
            # the kernel's f32 epilogue.
            amax = jnp.max(jnp.abs(w_t), axis=0, keepdims=True)        # (1, out)
            col_scale = jnp.maximum(amax, 1e-8) / 127.0
            w_store = jnp.clip(jnp.round(w_t / col_scale), -127, 127).astype(jnp.int8)
        else:
            w_store = w_t.astype(param_dtype)
            col_scale = jnp.ones((1, out_features), jnp.float32)

        pad_cols = padded_out - out_features
        # Pre-block the weight into a contiguous (grid_n, dim, tile_n) layout so
        # each weight-tile DMA is one contiguous HBM read.
        w_store = jnp.pad(w_store, ((0, 0), (0, pad_cols)))
        self.weight_blocked = jnp.transpose(
            w_store.reshape(dim, grid_n, tile_n), (1, 0, 2))
        # Bias / scale: resident (grid_n, 1, tile_n) f32 (no per-step DMA).
        bias_p = jnp.pad(b[None, :].astype(jnp.float32), ((0, 0), (0, pad_cols)))
        scale_p = jnp.pad(col_scale.astype(jnp.float32), ((0, 0), (0, pad_cols)))
        self.bias_blocked = jnp.transpose(
            bias_p.reshape(1, grid_n, tile_n), (1, 0, 2))
        self.scale_blocked = jnp.transpose(
            scale_p.reshape(1, grid_n, tile_n), (1, 0, 2))

    def __call__(self, vec):
        # vec: (B, dim)
        B = vec.shape[0]
        out = modulation_matmul(
            vec, self.weight_blocked, self.scale_blocked, self.bias_blocked,
            tile_n=self.tile_n, out_dim=self.out_features, vmem_cap=self.vmem_cap)
        # Single reshape instead of 6 slices of the flat (B, mult*dim) output.
        out = out.reshape(B, self.multiplier, self.dim)
        chunks = [out[:, i:i + 1, :] for i in range(self.multiplier)]  # (B,1,dim) each
        first = ModulationOut(*chunks[:3])
        second = ModulationOut(*chunks[3:]) if self.is_double else None
        return first, second


# ----------------------------------------------------------------------------
# Reference + test
# ----------------------------------------------------------------------------
def _reference(vec, w_master, b_master):
    x = vec.astype(jnp.float32)
    silu = x * jax.nn.sigmoid(x)
    return silu @ w_master.T + b_master[None, :]


def _gather(first, second):
    parts = [first.shift, first.scale, first.gate]
    if second is not None:
        parts += [second.shift, second.scale, second.gate]
    return jnp.concatenate(parts, axis=-1)


if __name__ == "__main__":
    key = jax.random.PRNGKey(0)
    k_param, k_vec = jax.random.split(key)

    B, dim = 2, 32
    double = True

    vec = jax.random.normal(k_vec, (B, dim), dtype=jnp.float32)

    # --- production config: bf16 weights, single tile (loose tolerance) ---
    mod = Modulation(dim, double, key=k_param, param_dtype=jnp.bfloat16)
    first, second = mod(vec)
    jax.block_until_ready(first.shift)
    assert second is not None
    jax.block_until_ready(second.gate)
    assert first.shift.shape == (B, 1, dim)
    assert second.gate.shape == (B, 1, dim)
    ref = _reference(vec, mod._w_master, mod._b_master)[:, None, :]
    assert jnp.allclose(_gather(first, second), ref, atol=2e-2, rtol=2e-2), \
        "bf16 kernel mismatch vs reference"

    # --- f32 weights: tight-tolerance check of the kernel math itself ---
    mod32 = Modulation(dim, double, key=k_param, param_dtype=jnp.float32)
    f1, f2 = mod32(vec)
    jax.block_until_ready(f1.shift)
    ref32 = _reference(vec, mod32._w_master, mod32._b_master)[:, None, :]
    assert jnp.allclose(_gather(f1, f2), ref32, atol=1e-5, rtol=1e-5), \
        "f32 kernel mismatch vs reference"

    # --- multi-tile path: forced tile_n=128 -> grid_n=2, partial last block ---
    mod_mt = Modulation(dim, double, key=k_param, param_dtype=jnp.bfloat16,
                        tile_n=128)
    m1, m2 = mod_mt(vec)
    jax.block_until_ready(m1.shift)
    assert jnp.allclose(_gather(m1, m2), ref, atol=2e-2, rtol=2e-2), \
        "multi-tile kernel mismatch vs reference"

    # --- int8 per-column-quantized weights (HBM byte-reduction lever) ---
    modq = Modulation(dim, double, key=k_param, quantize=True)
    q1, q2 = modq(vec)
    jax.block_until_ready(q1.shift)
    assert jnp.allclose(_gather(q1, q2), ref, atol=2e-2, rtol=2e-2), \
        "int8 kernel mismatch vs reference"

    print("KERNEL_OK")
</pallas_src>

<mosaic_0001>
module attributes {stable_mosaic.version = 11 : i64} {
  func.func @_modulation_kernel(%arg0: i32, %arg1: memref<2x32xf32, #tpu.memory_space<vmem>>, %arg2: memref<1x32x192xbf16, #tpu.memory_space<vmem>>, %arg3: memref<1x1x192xf32, #tpu.memory_space<vmem>>, %arg4: memref<1x1x192xf32, #tpu.memory_space<vmem>>, %arg5: memref<2x192xf32, #tpu.memory_space<vmem>>) attributes {dimension_semantics = [#tpu.dimension_semantics<parallel>], iteration_bounds = array<i64: 1>, scalar_prefetch = 0 : i64, scratch_operands = 0 : i64, tpu.core_type = #tpu.core_type<tc>, window_params = [{pipeline_mode = #tpu.pipeline_mode<synchronous>, transform_indices = @transform_0, window_bounds = array<i64: 2, 32>}, {transform_indices = @transform_1, window_bounds = array<i64: 1, 32, 192>}, {pipeline_mode = #tpu.pipeline_mode<synchronous>, transform_indices = @transform_2, window_bounds = array<i64: 1, 1, 192>}, {pipeline_mode = #tpu.pipeline_mode<synchronous>, transform_indices = @transform_3, window_bounds = array<i64: 1, 1, 192>}, {transform_indices = @transform_4, window_bounds = array<i64: 2, 192>}]} {
    %c0 = arith.constant 0 : index
    %c0_0 = arith.constant 0 : index
    %0 = vector.load %arg1[%c0, %c0_0] : memref<2x32xf32, #tpu.memory_space<vmem>>, vector<2x32xf32>
    %1 = arith.negf %0 : vector<2x32xf32>
    %2 = math.exp %1 : vector<2x32xf32>
    %cst = arith.constant 1.000000e+00 : f32
    %3 = vector.broadcast %cst : f32 to vector<2x32xf32>
    %4 = arith.addf %3, %2 : vector<2x32xf32>
    %5 = arith.divf %3, %4 : vector<2x32xf32>
    %6 = arith.mulf %0, %5 : vector<2x32xf32>
    %c0_1 = arith.constant 0 : index
    %c0_2 = arith.constant 0 : index
    %c0_3 = arith.constant 0 : index
    %7 = vector.load %arg2[%c0_1, %c0_2, %c0_3] : memref<1x32x192xbf16, #tpu.memory_space<vmem>>, vector<1x32x192xbf16>
    %8 = vector.shape_cast %7 : vector<1x32x192xbf16> to vector<32x192xbf16>
    %9 = arith.truncf %6 : vector<2x32xf32> to vector<2x32xbf16>
    %cst_4 = arith.constant dense<0.000000e+00> : vector<2x192xf32>
    %10 = tpu.matmul %9, %8, %cst_4 {dimension_numbers = #tpu.dot_dimension_numbers<[1], [0], [0], [1], [0, 0, 1, 1], [], []>} : vector<2x32xbf16>, vector<32x192xbf16>, vector<2x192xf32> -> vector<2x192xf32>
    %11 = arith.index_cast %arg0 : i32 to index
    %c0_5 = arith.constant 0 : index
    %c0_6 = arith.constant 0 : index
    %12 = vector.load %arg3[%11, %c0_5, %c0_6] : memref<1x1x192xf32, #tpu.memory_space<vmem>>, vector<1x1x192xf32>
    %13 = vector.shape_cast %12 : vector<1x1x192xf32> to vector<1x192xf32>
    %14 = vector.broadcast %13 : vector<1x192xf32> to vector<2x192xf32>
    %15 = arith.mulf %10, %14 : vector<2x192xf32>
    %16 = arith.index_cast %arg0 : i32 to index
    %c0_7 = arith.constant 0 : index
    %c0_8 = arith.constant 0 : index
    %17 = vector.load %arg4[%16, %c0_7, %c0_8] : memref<1x1x192xf32, #tpu.memory_space<vmem>>, vector<1x1x192xf32>
    %18 = vector.shape_cast %17 : vector<1x1x192xf32> to vector<1x192xf32>
    %19 = vector.broadcast %18 : vector<1x192xf32> to vector<2x192xf32>
    %20 = arith.addf %15, %19 : vector<2x192xf32>
    %c0_9 = arith.constant 0 : index
    %c0_10 = arith.constant 0 : index
    %21 = vector.load %arg5[%c0_9, %c0_10] : memref<2x192xf32, #tpu.memory_space<vmem>>, vector<2x192xf32>
    tpu.vector_store %arg5[%c0_9, %c0_10], %20 {strides = array<i32>} : memref<2x192xf32, #tpu.memory_space<vmem>>, vector<2x192xf32>,
    return
  }
  func.func @transform_0(%arg0: i32) -> (i32, i32) {
    %c0_i32 = arith.constant 0 : i32
    %c0_i32_0 = arith.constant 0 : i32
    %c0_i32_1 = arith.constant 0 : i32
    return %c0_i32, %c0_i32_0 : i32, i32
  }
  func.func @transform_1(%arg0: i32) -> (i32, i32, i32) {
    %c0_i32 = arith.constant 0 : i32
    %c0_i32_0 = arith.constant 0 : i32
    %c0_i32_1 = arith.constant 0 : i32
    return %arg0, %c0_i32, %c0_i32_0 : i32, i32, i32
  }
  func.func @transform_2(%arg0: i32) -> (i32, i32, i32) {
    %c0_i32 = arith.constant 0 : i32
    %c0_i32_0 = arith.constant 0 : i32
    %c0_i32_1 = arith.constant 0 : i32
    %c0_i32_2 = arith.constant 0 : i32
    return %c0_i32, %c0_i32_0, %c0_i32_1 : i32, i32, i32
  }
  func.func @transform_3(%arg0: i32) -> (i32, i32, i32) {
    %c0_i32 = arith.constant 0 : i32
    %c0_i32_0 = arith.constant 0 : i32
    %c0_i32_1 = arith.constant 0 : i32
    %c0_i32_2 = arith.constant 0 : i32
    return %c0_i32, %c0_i32_0, %c0_i32_1 : i32, i32, i32
  }
  func.func @transform_4(%arg0: i32) -> (i32, i32) {
    %c0_i32 = arith.constant 0 : i32
    %c0_i32_0 = arith.constant 0 : i32
    return %c0_i32, %arg0 : i32, i32
  }
}

</mosaic_0001>

<llo_original>
// kernel: tpu_custom_call.1
$region0: #{tpu_custom_call.1}
  #allocation0 [shape = 'u32[]', space=smem, size = 0x4, offset = 0x4, fixed_abs, tag = 'smem constant byte address 0x4 - core index']
  #allocation1 [shape = 'u32[144,128]{1,0:T(1,128)}', space=vmem, size = 0x12000, scoped, tag = 'internal scratch']
  %s0 = inlined_call_operand.hbm [shape: f32[2,32], index: 0, kind: input, shape index: {}]
  %s1 = inlined_call_operand.hbm [shape: bf16[1,32,192], index: 1, kind: input, shape index: {}]
  %s2 = inlined_call_operand.vmem [shape: f32[1,1,192], index: 2, kind: input, shape index: {}]
  %s3 = inlined_call_operand.vmem [shape: f32[1,1,192], index: 3, kind: input, shape index: {}]
  %s4 = inlined_call_operand.hbm [shape: f32[2,192], index: 4, kind: output, shape index: {}]
  %s5 = sld [smem:[#allocation0]]
  $region34: #{tpu_custom_call.1} parent=0
    _
  %s7 = ssub.s32 1, %s5
  %s8 = scalar_select 0, %s7, %s5
  $region1: #{tpu_custom_call.1} parent=0
    #allocation2 [shape = 'u8[1024]{0}', space=vmem, size = 0x400, scoped, tag = 'input window, operand 0, single buffered']
    #allocation3 [shape = 's32[1]{0}', space=sflag, size = 0x4, scoped, tag = 'scoped memory for tpu_custom_call.1']
    #allocation4 [shape = 's32[1]{0}', space=sflag, size = 0x4, scoped, tag = 'scoped memory for tpu_custom_call.1']
    #allocation5 [shape = 'u8[16384]{0}', space=vmem, size = 0x4000, scoped, tag = 'input window, operand 1, single buffered']
    #allocation6 [shape = 's32[1]{0}', space=sflag, size = 0x4, scoped, tag = 'scoped memory for tpu_custom_call.1']
    #allocation7 [shape = 'u8[2048]{0}', space=vmem, size = 0x800, scoped, tag = 'output window, operand 0, single buffered']
    %9 = vsyncpa [#allocation3], 0
    %10 = vsyncpa [#allocation6], 0
    %11 = vsyncpa [#allocation4], 0
    // Predicated region
    $region2: #{tpu_custom_call.1} parent=1 // pred_check
      _
    $region3: #{tpu_custom_call.1} parent=1 // pred_check_branch
      %13 = sbr.rel (0) target = $region5
    $region4: #{tpu_custom_call.1} parent=1 // pred_region
      %s15 = ssub.s32 32, 32
      %16 = vsyncadd [#allocation3], %s15
      %s18 = sshll.u32 [#allocation2], 4
      %s19 = int_to_ptr.vmem [resolvable:$true] %s18
      %21 = dma.hbm_to_vmem [thread:$0]  %s0, 32, %s19, [#allocation3]
    $region5: #{tpu_custom_call.1} parent=1 // pred_fallthru
      _
    // Predicated region
    $region6: #{tpu_custom_call.1} parent=1 // pred_check
      _
    $region7: #{tpu_custom_call.1} parent=1 // pred_check_branch
      %23 = sbr.rel (0) target = $region9
    $region8: #{tpu_custom_call.1} parent=1 // pred_region
      %s25 = ssub.s32 512, 512
      %26 = vsyncadd [#allocation6], %s25
      %s27 = sshll.u32 [#allocation5], 4
      %s28 = int_to_ptr.vmem [resolvable:$true] %s27
      %33 = dma.hbm_to_vmem [thread:$0]  %s1, 512, %s28, [#allocation6], 128, 128, 8
    $region9: #{tpu_custom_call.1} parent=1 // pred_fallthru
      _
    // Predicated region
    $region10: #{tpu_custom_call.1} parent=1 // pred_check
      _
    $region11: #{tpu_custom_call.1} parent=1 // pred_check_branch
      %35 = sbr.rel (0) target = $region13
    $region12: #{tpu_custom_call.1} parent=1 // pred_region
      _
    $region13: #{tpu_custom_call.1} parent=1 // pred_fallthru
      _
    // Predicated region
    $region14: #{tpu_custom_call.1} parent=1 // pred_check
      _
    $region15: #{tpu_custom_call.1} parent=1 // pred_check_branch
      %37 = sbr.rel (0) target = $region17
    $region16: #{tpu_custom_call.1} parent=1 // pred_region
      _
    $region17: #{tpu_custom_call.1} parent=1 // pred_fallthru
      _
    // Predicated region
    $region18: #{tpu_custom_call.1} parent=1 // pred_check
      _
    $region19: #{tpu_custom_call.1} parent=1 // pred_check_branch
      %39 = sbr.rel (0) target = $region21
    $region20: #{tpu_custom_call.1} parent=1 // pred_region
      %40 = dma.done [#allocation3], 32
    $region21: #{tpu_custom_call.1} parent=1 // pred_fallthru
      _
    // Predicated region
    $region22: #{tpu_custom_call.1} parent=1 // pred_check
      _
    $region23: #{tpu_custom_call.1} parent=1 // pred_check_branch
      %42 = sbr.rel (0) target = $region25
    $region24: #{tpu_custom_call.1} parent=1 // pred_region
      %43 = dma.done [#allocation6], 512
    $region25: #{tpu_custom_call.1} parent=1 // pred_fallthru
      _
    %v45 = vld [vmem:[#allocation2] sm:$0x3]
    %v46 = vxor.u32 %v45, 2147483648
    %v47 = vmul.f32 %v46, 1.442695
    %v48 = vpow.pop %v47
    %v49 = vadd.f32 %v48, 1.0
    %v50 = vrcp.pop %v49
    %v51 = vmul.f32 1.0, %v50
    %v52 = vmul.f32 %v45, %v51
    %v53 = vld [vmem:[#allocation5] sm:$0xff]
    %v54 = vld [vmem:[#allocation5 + $0x8] sm:$0xff]
    %v55 = vld [vmem:[#allocation5 + $0x10] sm:$0xff]
    %v56 = vld [vmem:[#allocation5 + $0x18] sm:$0xff]
    %v57 = vpack.c.bf16 %v52, %v52
    %v62 = vunpack.c.l.b16 %v53
    %v63 = vunpack.c.h.b16 %v53
    %v64 = vunpack.c.l.b16 %v54
    %v65 = vunpack.c.h.b16 %v54
    %v66 = vunpack.c.l.b16 %v55
    %v67 = vunpack.c.h.b16 %v55
    %v68 = vunpack.c.l.b16 %v56
    %v69 = vunpack.c.h.b16 %v56
    %v70 = vpack.c.b16 %v64, %v62
    %v71 = vpack.c.b16 %v65, %v63
    %v72 = vpack.c.b16 %v68, %v66
    %v73 = vpack.c.b16 %v69, %v67
    %vm78 = vcmask 261120
    %v80 = vsel %vm78, %v57, 0
    %82 = vmatprep.subr.bf16.mxu0 %v71
    %83 = vmatpush1.bf16.msra.mxu0 %v70
    %84 = vmatprep.subr.bf16.mxu0 %v73
    %85 = vmatpush1.bf16.msra.mxu0 %v72
    %86 = vmatprep.subr.bf16.mxu0 0
    %87 = vmatpush1.bf16.msra.mxu0 0
    %88 = vmatprep.subr.bf16.mxu0 0
    %89 = vmatpush1.bf16.msra.mxu0 0
    %90 = vmatprep.subr.bf16.mxu0 0
    %91 = vmatpush1.bf16.msra.mxu0 0
    %92 = vmatprep.subr.bf16.mxu0 0
    %93 = vmatpush1.bf16.msra.mxu0 0
    %94 = vmatprep.subr.bf16.mxu0 0
    %95 = vmatpush1.bf16.msra.mxu0 0
    %96 = vmatprep.subr.bf16.mxu0 0
    %97 = vmatpush1.bf16.msra.mxu0 0
    %98 = vmatprep.subr.bf16.mxu0 0
    %99 = vmatpush1.bf16.msra.mxu0 0
    %100 = vmatprep.subr.bf16.mxu0 0
    %101 = vmatpush1.bf16.msra.mxu0 0
    %102 = vmatprep.subr.bf16.mxu0 0
    %103 = vmatpush1.bf16.msra.mxu0 0
    %104 = vmatprep.subr.bf16.mxu0 0
    %105 = vmatpush1.bf16.msra.mxu0 0
    %106 = vmatprep.subr.bf16.mxu0 0
    %107 = vmatpush1.bf16.msra.mxu0 0
    %108 = vmatprep.subr.bf16.mxu0 0
    %109 = vmatpush1.bf16.msra.mxu0 0
    %110 = vmatprep.subr.bf16.mxu0 0
    %111 = vmatpush1.bf16.msra.mxu0 0
    %112 = vmatprep.subr.bf16.mxu0 0
    %113 = vmatpush1.bf16.msra.mxu0 0
    %114 = vmatprep.mubr.bf16.mxu0 0
    %115 = vmatmul.mubr.bf16.gmra.mrb[0].mxu0 %v80
    %v116 = vpop.f32.mrb[0].mxu0
    %v117 = vadd.f32 0.0, %v116
    %v118 = vpop.f32.mrb[0].mxu0
    %v119 = vadd.f32 0.0, %v118
    %v120 = vpop.f32.mrb[0].mxu0
    %v121 = vpop.f32.mrb[0].mxu0
    %122 = vdwg.mxu0
    %s123 = smul.u32 0, 2
    %s124 = scalar_lea.vmem %s2, %s123
    %v125 = vld [vmem:[%s124] sm:$0x3]
    %v127 = vlaneseq
    %v128 = vshrl.u32 %v127, 7
    %v129 = vsub.s32 0, %v128
    %v130 = vrot.slane %v125, %v129
    %v131 = vlaneseq
    %v132 = vshrl.u32 %v131, 7
    %v133 = vsub.s32 1, %v132
    %v134 = vrot.slane %v125, %v133
    %v137 = vmul.f32 %v117, %v130
    %v138 = vmul.f32 %v119, %v134
    %s139 = scalar_lea.vmem %s3, %s123
    %v140 = vld [vmem:[%s139] sm:$0x3]
    %v142 = vlaneseq
    %v143 = vshrl.u32 %v142, 7
    %v144 = vsub.s32 0, %v143
    %v145 = vrot.slane %v140, %v144
    %v146 = vlaneseq
    %v147 = vshrl.u32 %v146, 7
    %v148 = vsub.s32 1, %v147
    %v149 = vrot.slane %v140, %v148
    %v152 = vadd.f32 %v137, %v145
    %v153 = vadd.f32 %v138, %v149
    %v156 = vcombine.low %v152, %v153
    %v158 = vunpack.c.l.s4 1983009808
    %v159 = vunpack.c.0.s8 %v158
    %v160 = vlaneseq
    %v161 = vshrl.u32 %v160, 7
    %v162 = vsub.s32 %v159, %v161
    %v163 = vrot.slane %v156, %v162
    %vm165 = vcmask 1041408
    %vm166 = vcmask 519170
    %vm167 = vmor %vm166, %vm165
    %168 = vst.msk [vmem:[#allocation7] sm:$0xf] %vm167, %v163
    // Predicated region
    $region26: #{tpu_custom_call.1} parent=1 // pred_check
      _
    $region27: #{tpu_custom_call.1} parent=1 // pred_check_branch
      %170 = sbr.rel (0) target = $region29
    $region28: #{tpu_custom_call.1} parent=1 // pred_region
      %s172 = ssub.s32 64, 64
      %173 = vsyncadd [#allocation4], %s172
      %s175 = sshll.u32 [#allocation7], 4
      %s176 = int_to_ptr.vmem [resolvable:$true] %s175
      %178 = dma.vmem_to_hbm [thread:$0]  %s176, 64, %s4, [#allocation4]
    $region29: #{tpu_custom_call.1} parent=1 // pred_fallthru
      _
    // Predicated region
    $region30: #{tpu_custom_call.1} parent=1 // pred_check
      _
    $region31: #{tpu_custom_call.1} parent=1 // pred_check_branch
      %180 = sbr.rel (0) target = $region33
    $region32: #{tpu_custom_call.1} parent=1 // pred_region
      %181 = dma.done [#allocation4], 64
    $region33: #{tpu_custom_call.1} parent=1 // pred_fallthru
      _
    %182 = vsyncpa [#allocation3], 1
    %183 = vsyncpa [#allocation6], 1
    %184 = vsyncpa [#allocation4], 1

</llo_original>
